<compile_context>
chip_gen: v7x
topology: tpu7x:2x2x1
jax: 0.10.0
libtpu: 0.0.40
codegen_flags: <defaults>
</compile_context>

<pallas_src>
import math

import jax
import jax.numpy as jnp
from jax.experimental import pallas as pl
from jax.experimental.pallas import tpu as pltpu


# ----------------------------------------------------------------------------
# small math helpers (pure jnp -> usable both inside Pallas kernels and in the
# plain-JAX reference)
# ----------------------------------------------------------------------------
_GELU_C = math.sqrt(2.0 / math.pi)


def _gelu(x):
    # tanh-approximation GELU (EUP-friendly inside Mosaic).
    return 0.5 * x * (1.0 + jnp.tanh(_GELU_C * (x + 0.044715 * x * x * x)))


def _layernorm(x, gamma, beta, eps=1e-5):
    mean = jnp.mean(x, axis=-1, keepdims=True)
    var = jnp.mean(jnp.square(x - mean), axis=-1, keepdims=True)
    return (x - mean) * jax.lax.rsqrt(var + eps) * gamma + beta


def _softmax_last(x):
    m = jnp.max(x, axis=-1, keepdims=True)
    e = jnp.exp(x - m)
    return e / jnp.sum(e, axis=-1, keepdims=True)


def make_positional_encoding_table(max_len: int, dim_embed: int) -> jnp.ndarray:
    """Sinusoidal table identical to PositionalEncoding.__init__ (squeezed (L, D) layout)."""
    assert dim_embed % 2 == 0, "dim_embed must be even for the sin/cos interleave"
    position = jnp.arange(0, max_len, dtype=jnp.float32)[:, None]
    div_term = jnp.exp(
        jnp.arange(0, dim_embed, 2, dtype=jnp.float32) * (-math.log(10000.0) / dim_embed)
    )
    angles = position * div_term
    pe = jnp.zeros((max_len, dim_embed), dtype=jnp.float32)
    pe = pe.at[:, 0::2].set(jnp.sin(angles))
    pe = pe.at[:, 1::2].set(jnp.cos(angles))
    return pe


# ----------------------------------------------------------------------------
# single-block pallas_call helper (whole arrays in VMEM, grid of 1 step)
# ----------------------------------------------------------------------------
def _full_spec(shape):
    zeros = (0,) * len(shape)
    return pl.BlockSpec(shape, lambda i: zeros)


def _pcall(kernel, args, out_shape):
    return pl.pallas_call(
        kernel,
        out_shape=out_shape,
        grid_spec=pltpu.PrefetchScalarGridSpec(
            num_scalar_prefetch=0,
            grid=(1,),
            in_specs=[_full_spec(a.shape) for a in args],
            out_specs=_full_spec(out_shape.shape),
        ),
        compiler_params=pltpu.CompilerParams(dimension_semantics=("arbitrary",)),
    )(*args)


# ----------------------------------------------------------------------------
# Kernel A: embed Linear -> gelu -> +PE -> (dropout=id) -> LayerNorm
# x:(B*S, Din_pad)  w:(Din_pad, D)  b/g/beta:(1, D)  pe:(B*S, D)  ->  (B*S, D)
# ----------------------------------------------------------------------------
def _embed_kernel(x_ref, w_ref, b_ref, pe_ref, g_ref, beta_ref, o_ref):
    h = jnp.dot(x_ref[...], w_ref[...], preferred_element_type=jnp.float32) + b_ref[...]
    h = _gelu(h) + pe_ref[...]
    o_ref[...] = _layernorm(h, g_ref[...], beta_ref[...]).astype(o_ref.dtype)


# ----------------------------------------------------------------------------
# Kernel B: one full GPT2 decoder layer (MHA + FFN + both residual LayerNorms)
# x:(B*S, D), attn_bias:(B, S, S) additive (-1e9 where masked, 0 elsewhere)
# ----------------------------------------------------------------------------
def _make_decoder_layer_kernel(B, S, H, dh):
    scale = 1.0 / math.sqrt(dh)

    def kernel(x_ref, bias_ref, wq_ref, wk_ref, wv_ref, wo_ref, bo_ref,
               g1_ref, be1_ref, w1_ref, c1_ref, w2_ref, c2_ref, g2_ref, be2_ref,
               o_ref):
        x = x_ref[...]                                        # (B*S, D)
        q = jnp.dot(x, wq_ref[...], preferred_element_type=jnp.float32)
        k = jnp.dot(x, wk_ref[...], preferred_element_type=jnp.float32)
        v = jnp.dot(x, wv_ref[...], preferred_element_type=jnp.float32)
        wo = wo_ref[...]
        D = wo.shape[1]

        for b in range(B):                                    # static unroll (tiny B)
            r0, r1 = b * S, (b + 1) * S
            xb, qb, kb, vb = x[r0:r1, :], q[r0:r1, :], k[r0:r1, :], v[r0:r1, :]
            bias_b = bias_ref[b]                              # (S, S), broadcast over heads
            ctx = jnp.zeros((S, D), jnp.float32)
            for h in range(H):                                # static unroll (tiny H)
                c0, c1 = h * dh, (h + 1) * dh
                qh, kh, vh = qb[:, c0:c1], kb[:, c0:c1], vb[:, c0:c1]
                # scores = Q K^T / sqrt(dh) + mask bias  (masked_fill(-1e9) ~ additive -1e9)
                s = jax.lax.dot_general(qh, kh, (((1,), (1,)), ((), ())),
                                        preferred_element_type=jnp.float32)
                s = s * scale + bias_b
                p = _softmax_last(s)                          # attn dropout = identity (eval)
                av = jnp.dot(p, vh, preferred_element_type=jnp.float32)
                # concat-over-heads @ Wo  ==  sum_h av_h @ Wo[h*dh:(h+1)*dh, :]
                ctx = ctx + jnp.dot(av, wo[c0:c1, :], preferred_element_type=jnp.float32)
            attn_out = ctx + bo_ref[...]                      # output-proj bias (dropout=id)
            h1 = _layernorm(xb + attn_out, g1_ref[...], be1_ref[...])
            f = _gelu(jnp.dot(h1, w1_ref[...], preferred_element_type=jnp.float32) + c1_ref[...])
            ffn = jnp.dot(f, w2_ref[...], preferred_element_type=jnp.float32) + c2_ref[...]
            out_b = _layernorm(h1 + ffn, g2_ref[...], be2_ref[...])
            o_ref[r0:r1, :] = out_b.astype(o_ref.dtype)

    return kernel


# ----------------------------------------------------------------------------
# Kernel C: gelu(fc_condi(flat)) -> gelu(fc1) -> logit   (flat is lane-dense (B, S*D))
# ----------------------------------------------------------------------------
def _cond_logit_kernel(x_ref, wc_ref, bc_ref, w1_ref, b1_ref, wl_ref, bl_ref, o_ref):
    c = _gelu(jnp.dot(x_ref[...], wc_ref[...], preferred_element_type=jnp.float32) + bc_ref[...])
    h = _gelu(jnp.dot(c, w1_ref[...], preferred_element_type=jnp.float32) + b1_ref[...])
    o_ref[...] = (jnp.dot(h, wl_ref[...], preferred_element_type=jnp.float32)
                  + bl_ref[...]).astype(o_ref.dtype)


# ----------------------------------------------------------------------------
# Kernel D: value MLP  fc2 -> gelu -> fc3 -> gelu -> fc4
# ----------------------------------------------------------------------------
def _value_mlp_kernel(s_ref, w2_ref, b2_ref, w3_ref, b3_ref, w4_ref, b4_ref, o_ref):
    h = _gelu(jnp.dot(s_ref[...], w2_ref[...], preferred_element_type=jnp.float32) + b2_ref[...])
    h = _gelu(jnp.dot(h, w3_ref[...], preferred_element_type=jnp.float32) + b3_ref[...])
    o_ref[...] = (jnp.dot(h, w4_ref[...], preferred_element_type=jnp.float32)
                  + b4_ref[...]).astype(o_ref.dtype)


# ----------------------------------------------------------------------------
# Full forward pass (Pallas kernels + thin JAX glue for concat / reshape / sampling)
# ----------------------------------------------------------------------------
def value_net_forward(params, data, sample_key, cfg):
    B, S = data["observation"].shape[:2]
    D, H, dh = cfg["dim_hidden"], cfg["num_heads"], cfg["dim_head"]
    cat, cls = cfg["category_size"], cfg["class_size"]

    # -- GPT2 input assembly (wrapper glue: concat + zero-pad feature dim to x8) --
    inputs = jnp.concatenate(
        [data["observation"], data["action"], data["reward"]], axis=-1)
    din = inputs.shape[-1]
    din_pad = ((din + 7) // 8) * 8
    inputs = jnp.pad(inputs, ((0, 0), (0, 0), (0, din_pad - din)))
    x2 = inputs.reshape(B * S, din_pad).astype(jnp.float32)
    pe_rows = jnp.tile(params["pe"][:S, :], (B, 1))           # (B*S, D), pre-broadcast

    emb = _pcall(
        _embed_kernel,
        [x2, params["w_embed"], params["b_embed"], pe_rows,
         params["ln_g"], params["ln_b"]],
        jax.ShapeDtypeStruct((B * S, D), jnp.float32))

    # attention mask -> additive bias (True = attend).  NOTE: the original PyTorch
    # repeats+transposes the mask in a way that only type-checks when B == num_heads;
    # we implement the intended broadcast-over-heads semantics.
    attn_bias = jnp.where(data["mask"], 0.0, -1e9).astype(jnp.float32)   # (B, S, S)

    layer_kernel = _make_decoder_layer_kernel(B, S, H, dh)
    h = emb
    for lp in params["layers"]:
        h = _pcall(
            layer_kernel,
            [h, attn_bias, lp["wq"], lp["wk"], lp["wv"], lp["wo"], lp["bo"],
             lp["ln1_g"], lp["ln1_b"], lp["w1"], lp["b1"], lp["w2"], lp["b2"],
             lp["ln2_g"], lp["ln2_b"]],
            jax.ShapeDtypeStruct((B * S, D), jnp.float32))

    dec_flat = h.reshape(B, S * D)                            # lane-dense hand-off (B, 256)

    logit = _pcall(
        _cond_logit_kernel,
        [dec_flat, params["w_condi"], params["b_condi"],
         params["w_fc1"], params["b_fc1"],
         params["w_logit"], params["b_logit"]],
        jax.ShapeDtypeStruct((B, cat * cls), jnp.float32))

    # -- discrete stochastic state (JAX glue) --
    # TODO(synk): OneHotCategorical sampling / straight-through has no clean Pallas
    # equivalent; done with jax.random here.
    logit3 = logit.reshape(B, cat, cls)
    probs = jax.nn.softmax(logit3, axis=-1)
    logp = jax.nn.log_softmax(logit3, axis=-1)
    entropy = -jnp.sum(probs * logp, axis=-1)                 # (B, category_size)
    idx = jax.random.categorical(sample_key, logit3, axis=-1)
    one_hot = jax.nn.one_hot(idx, cls, dtype=jnp.float32)
    stoch = one_hot + probs - jax.lax.stop_gradient(probs)    # straight-through estimator
    stoch_flat = stoch.reshape(B, cat * cls)

    v = _pcall(
        _value_mlp_kernel,
        [stoch_flat, params["w_fc2"], params["b_fc2"],
         params["w_fc3"], params["b_fc3"],
         params["w_fc4"], params["b_fc4"]],
        jax.ShapeDtypeStruct((B, 1), jnp.float32))

    # module forward returns (v, entropy); logit / stoch_flat also returned for testing.
    return v, entropy, logit, stoch_flat


# ----------------------------------------------------------------------------
# Pure-JAX reference (same math, no Pallas) for correctness checking
# ----------------------------------------------------------------------------
def reference_forward(params, data, stoch_flat, cfg):
    B, S = data["observation"].shape[:2]
    D, H, dh = cfg["dim_hidden"], cfg["num_heads"], cfg["dim_head"]
    cat, cls = cfg["category_size"], cfg["class_size"]

    inputs = jnp.concatenate(
        [data["observation"], data["action"], data["reward"]], axis=-1)
    din = inputs.shape[-1]
    x = _gelu(inputs @ params["w_embed"][:din, :] + params["b_embed"])
    x = x + params["pe"][:S][None]
    x = _layernorm(x, params["ln_g"], params["ln_b"])
    bias = jnp.where(data["mask"], 0.0, -1e9).astype(jnp.float32)       # (B, S, S)

    for lp in params["layers"]:
        q = (x @ lp["wq"]).reshape(B, S, H, dh).transpose(0, 2, 1, 3)
        k = (x @ lp["wk"]).reshape(B, S, H, dh).transpose(0, 2, 1, 3)
        v = (x @ lp["wv"]).reshape(B, S, H, dh).transpose(0, 2, 1, 3)
        s = jnp.einsum("bhqd,bhkd->bhqk", q, k) / math.sqrt(dh) + bias[:, None]
        p = _softmax_last(s)
        av = jnp.einsum("bhqk,bhkd->bhqd", p, v)
        ctx = av.transpose(0, 2, 1, 3).reshape(B, S, D)
        attn_out = ctx @ lp["wo"] + lp["bo"]
        h1 = _layernorm(x + attn_out, lp["ln1_g"], lp["ln1_b"])
        f = _gelu(h1 @ lp["w1"] + lp["b1"])
        ffn = f @ lp["w2"] + lp["b2"]
        x = _layernorm(h1 + ffn, lp["ln2_g"], lp["ln2_b"])

    flat = x.reshape(B, S * D)
    c = _gelu(flat @ params["w_condi"] + params["b_condi"])
    h = _gelu(c @ params["w_fc1"] + params["b_fc1"])
    logit = h @ params["w_logit"] + params["b_logit"]

    probs = jax.nn.softmax(logit.reshape(B, cat, cls), axis=-1)
    logp = jax.nn.log_softmax(logit.reshape(B, cat, cls), axis=-1)
    entropy = -jnp.sum(probs * logp, axis=-1)

    vv = _gelu(stoch_flat @ params["w_fc2"] + params["b_fc2"])
    vv = _gelu(vv @ params["w_fc3"] + params["b_fc3"])
    vv = vv @ params["w_fc4"] + params["b_fc4"]
    return vv, entropy, logit


# ----------------------------------------------------------------------------
# main
# ----------------------------------------------------------------------------
if __name__ == "__main__":
    cfg = dict(
        dim_observation=4, dim_action=2, dim_reward=1,
        dim_embed=32, dim_hidden=32, num_heads=4, dim_head=8,
        dim_ffn=64, num_layers=2, max_len=16, seq_len=8,
        dim_condition=32, node_size=32, category_size=4, class_size=8,
    )
    B, S = 2, cfg["seq_len"]
    D, F = cfg["dim_hidden"], cfg["dim_ffn"]
    din = cfg["dim_observation"] + cfg["dim_action"] + cfg["dim_reward"]
    din_pad = ((din + 7) // 8) * 8

    root = jax.random.PRNGKey(0)
    keys = iter(jax.random.split(root, 64))

    def lin(din_, dout_, bias=True):
        scale = 1.0 / math.sqrt(din_)
        w = jax.random.normal(next(keys), (din_, dout_), jnp.float32) * scale
        if bias:
            b = jax.random.normal(next(keys), (1, dout_), jnp.float32) * scale
            return w, b
        return w

    # --- parameters ---
    w_embed = jax.random.normal(next(keys), (din_pad, D), jnp.float32) / math.sqrt(din)
    w_embed = w_embed.at[din:, :].set(0.0)          # zero the padded input rows
    b_embed = jax.random.normal(next(keys), (1, D), jnp.float32) / math.sqrt(din)

    layers = []
    for _ in range(cfg["num_layers"]):
        wq = lin(D, D, bias=False)
        wk = lin(D, D, bias=False)
        wv = lin(D, D, bias=False)
        wo, bo = lin(D, D)
        w1, b1 = lin(D, F)
        w2, b2 = lin(F, D)
        layers.append(dict(
            wq=wq, wk=wk, wv=wv, wo=wo, bo=bo,
            ln1_g=jnp.ones((1, D), jnp.float32), ln1_b=jnp.zeros((1, D), jnp.float32),
            w1=w1, b1=b1, w2=w2, b2=b2,
            ln2_g=jnp.ones((1, D), jnp.float32), ln2_b=jnp.zeros((1, D), jnp.float32),
        ))

    w_condi, b_condi = lin(S * D, cfg["dim_condition"])
    w_fc1, b_fc1 = lin(cfg["dim_condition"], cfg["node_size"])
    w_logit, b_logit = lin(cfg["node_size"], cfg["category_size"] * cfg["class_size"])
    w_fc2, b_fc2 = lin(cfg["category_size"] * cfg["class_size"], cfg["node_size"])
    w_fc3, b_fc3 = lin(cfg["node_size"], cfg["node_size"])
    w_fc4, b_fc4 = lin(cfg["node_size"], 1)

    params = dict(
        pe=make_positional_encoding_table(cfg["max_len"], cfg["dim_embed"]),
        w_embed=w_embed, b_embed=b_embed,
        ln_g=jnp.ones((1, D), jnp.float32), ln_b=jnp.zeros((1, D), jnp.float32),
        layers=layers,
        w_condi=w_condi, b_condi=b_condi,
        w_fc1=w_fc1, b_fc1=b_fc1,
        w_logit=w_logit, b_logit=b_logit,
        w_fc2=w_fc2, b_fc2=b_fc2,
        w_fc3=w_fc3, b_fc3=b_fc3,
        w_fc4=w_fc4, b_fc4=b_fc4,
    )

    # --- example data (matches GPT2.forward's data dict; mask=True means "attend") ---
    data = dict(
        observation=jax.random.normal(next(keys), (B, S, cfg["dim_observation"]), jnp.float32),
        action=jax.random.normal(next(keys), (B, S, cfg["dim_action"]), jnp.float32),
        reward=jax.random.normal(next(keys), (B, S, cfg["dim_reward"]), jnp.float32),
        mask=jnp.ones((B, S, S), dtype=bool),
    )
    sample_key = next(keys)

    # --- run Pallas forward ---
    v, entropy, logit, stoch_flat = value_net_forward(params, data, sample_key, cfg)
    (v, entropy, logit, stoch_flat) = jax.block_until_ready((v, entropy, logit, stoch_flat))

    # --- plain-JAX reference check (shares the sampled stochastic state) ---
    v_ref, ent_ref, logit_ref = reference_forward(params, data, stoch_flat, cfg)

    assert v.shape == (B, 1)
    assert entropy.shape == (B, cfg["category_size"])
    assert bool(jnp.all(jnp.isfinite(v))) and bool(jnp.all(jnp.isfinite(entropy)))
    assert jnp.allclose(logit, logit_ref, atol=5e-2, rtol=5e-2), "logit mismatch vs reference"
    assert jnp.allclose(v, v_ref, atol=5e-2, rtol=5e-2), "value mismatch vs reference"
    assert jnp.allclose(entropy, ent_ref, atol=5e-2, rtol=5e-2), "entropy mismatch vs reference"

    print("KERNEL_OK")
</pallas_src>

<mosaic_0001>
module attributes {stable_mosaic.version = 11 : i64} {
  func.func @_embed_kernel(%arg0: i32, %arg1: memref<16x8xf32, #tpu.memory_space<vmem>>, %arg2: memref<8x32xf32, #tpu.memory_space<vmem>>, %arg3: memref<1x32xf32, #tpu.memory_space<vmem>>, %arg4: memref<16x32xf32, #tpu.memory_space<vmem>>, %arg5: memref<1x32xf32, #tpu.memory_space<vmem>>, %arg6: memref<1x32xf32, #tpu.memory_space<vmem>>, %arg7: memref<16x32xf32, #tpu.memory_space<vmem>>) attributes {dimension_semantics = [#tpu.dimension_semantics<arbitrary>], iteration_bounds = array<i64: 1>, scalar_prefetch = 0 : i64, scratch_operands = 0 : i64, tpu.core_type = #tpu.core_type<tc>, window_params = [{pipeline_mode = #tpu.pipeline_mode<synchronous>, transform_indices = @transform_0, window_bounds = array<i64: 16, 8>}, {pipeline_mode = #tpu.pipeline_mode<synchronous>, transform_indices = @transform_1, window_bounds = array<i64: 8, 32>}, {pipeline_mode = #tpu.pipeline_mode<synchronous>, transform_indices = @transform_2, window_bounds = array<i64: 1, 32>}, {pipeline_mode = #tpu.pipeline_mode<synchronous>, transform_indices = @transform_3, window_bounds = array<i64: 16, 32>}, {pipeline_mode = #tpu.pipeline_mode<synchronous>, transform_indices = @transform_4, window_bounds = array<i64: 1, 32>}, {pipeline_mode = #tpu.pipeline_mode<synchronous>, transform_indices = @transform_5, window_bounds = array<i64: 1, 32>}, {pipeline_mode = #tpu.pipeline_mode<synchronous>, transform_indices = @transform_6, window_bounds = array<i64: 16, 32>}]} {
    %c0 = arith.constant 0 : index
    %c0_0 = arith.constant 0 : index
    %0 = vector.load %arg1[%c0, %c0_0] : memref<16x8xf32, #tpu.memory_space<vmem>>, vector<16x8xf32>
    %c0_1 = arith.constant 0 : index
    %c0_2 = arith.constant 0 : index
    %1 = vector.load %arg2[%c0_1, %c0_2] : memref<8x32xf32, #tpu.memory_space<vmem>>, vector<8x32xf32>
    %cst = arith.constant dense<0.000000e+00> : vector<16x32xf32>
    %2 = tpu.matmul %0, %1, %cst {dimension_numbers = #tpu.dot_dimension_numbers<[1], [0], [0], [1], [0, 0, 1, 1], [], []>} : vector<16x8xf32>, vector<8x32xf32>, vector<16x32xf32> -> vector<16x32xf32>
    %c0_3 = arith.constant 0 : index
    %c0_4 = arith.constant 0 : index
    %3 = vector.load %arg3[%c0_3, %c0_4] : memref<1x32xf32, #tpu.memory_space<vmem>>, vector<1x32xf32>
    %4 = vector.broadcast %3 : vector<1x32xf32> to vector<16x32xf32>
    %5 = arith.addf %2, %4 : vector<16x32xf32>
    %cst_5 = arith.constant 5.000000e-01 : f32
    %6 = vector.broadcast %cst_5 : f32 to vector<16x32xf32>
    %7 = arith.mulf %6, %5 : vector<16x32xf32>
    %cst_6 = arith.constant 4.471500e-02 : f32
    %8 = vector.broadcast %cst_6 : f32 to vector<16x32xf32>
    %9 = arith.mulf %8, %5 : vector<16x32xf32>
    %10 = arith.mulf %9, %5 : vector<16x32xf32>
    %11 = arith.mulf %10, %5 : vector<16x32xf32>
    %12 = arith.addf %5, %11 : vector<16x32xf32>
    %cst_7 = arith.constant 0.797884583 : f32
    %13 = vector.broadcast %cst_7 : f32 to vector<16x32xf32>
    %14 = arith.mulf %13, %12 : vector<16x32xf32>
    %15 = math.tanh %14 : vector<16x32xf32>
    %cst_8 = arith.constant 1.000000e+00 : f32
    %16 = vector.broadcast %cst_8 : f32 to vector<16x32xf32>
    %17 = arith.addf %16, %15 : vector<16x32xf32>
    %18 = arith.mulf %7, %17 : vector<16x32xf32>
    %c0_9 = arith.constant 0 : index
    %c0_10 = arith.constant 0 : index
    %19 = vector.load %arg4[%c0_9, %c0_10] : memref<16x32xf32, #tpu.memory_space<vmem>>, vector<16x32xf32>
    %20 = arith.addf %18, %19 : vector<16x32xf32>
    %c0_11 = arith.constant 0 : index
    %c0_12 = arith.constant 0 : index
    %21 = vector.load %arg5[%c0_11, %c0_12] : memref<1x32xf32, #tpu.memory_space<vmem>>, vector<1x32xf32>
    %c0_13 = arith.constant 0 : index
    %c0_14 = arith.constant 0 : index
    %22 = vector.load %arg6[%c0_13, %c0_14] : memref<1x32xf32, #tpu.memory_space<vmem>>, vector<1x32xf32>
    %cst_15 = arith.constant dense<0.000000e+00> : vector<16xf32>
    %23 = vector.multi_reduction <add>, %20, %cst_15 [1] : vector<16x32xf32> to vector<16xf32>
    %24 = vector.shape_cast %23 : vector<16xf32> to vector<16x1xf32>
    %cst_16 = arith.constant 3.200000e+01 : f32
    %25 = vector.broadcast %cst_16 : f32 to vector<16x1xf32>
    %26 = arith.divf %24, %25 : vector<16x1xf32>
    %27 = vector.broadcast %26 : vector<16x1xf32> to vector<16x32xf32>
    %28 = arith.subf %20, %27 : vector<16x32xf32>
    %29 = arith.mulf %28, %28 : vector<16x32xf32>
    %cst_17 = arith.constant dense<0.000000e+00> : vector<16xf32>
    %30 = vector.multi_reduction <add>, %29, %cst_17 [1] : vector<16x32xf32> to vector<16xf32>
    %31 = vector.shape_cast %30 : vector<16xf32> to vector<16x1xf32>
    %cst_18 = arith.constant 3.200000e+01 : f32
    %32 = vector.broadcast %cst_18 : f32 to vector<16x1xf32>
    %33 = arith.divf %31, %32 : vector<16x1xf32>
    %34 = vector.broadcast %26 : vector<16x1xf32> to vector<16x32xf32>
    %35 = arith.subf %20, %34 : vector<16x32xf32>
    %cst_19 = arith.constant 9.99999974E-6 : f32
    %36 = vector.broadcast %cst_19 : f32 to vector<16x1xf32>
    %37 = arith.addf %33, %36 : vector<16x1xf32>
    %38 = math.rsqrt %37 : vector<16x1xf32>
    %39 = vector.broadcast %38 : vector<16x1xf32> to vector<16x32xf32>
    %40 = arith.mulf %35, %39 : vector<16x32xf32>
    %41 = vector.broadcast %21 : vector<1x32xf32> to vector<16x32xf32>
    %42 = arith.mulf %40, %41 : vector<16x32xf32>
    %43 = vector.broadcast %22 : vector<1x32xf32> to vector<16x32xf32>
    %44 = arith.addf %42, %43 : vector<16x32xf32>
    %c0_20 = arith.constant 0 : index
    %c0_21 = arith.constant 0 : index
    %45 = vector.load %arg7[%c0_20, %c0_21] : memref<16x32xf32, #tpu.memory_space<vmem>>, vector<16x32xf32>
    tpu.vector_store %arg7[%c0_20, %c0_21], %44 {strides = array<i32>} : memref<16x32xf32, #tpu.memory_space<vmem>>, vector<16x32xf32>,
    return
  }
  func.func @transform_0(%arg0: i32) -> (i32, i32) {
    %c0_i32 = arith.constant 0 : i32
    %c0_i32_0 = arith.constant 0 : i32
    %c0_i32_1 = arith.constant 0 : i32
    return %c0_i32, %c0_i32_0 : i32, i32
  }
  func.func @transform_1(%arg0: i32) -> (i32, i32) {
    %c0_i32 = arith.constant 0 : i32
    %c0_i32_0 = arith.constant 0 : i32
    %c0_i32_1 = arith.constant 0 : i32
    return %c0_i32, %c0_i32_0 : i32, i32
  }
  func.func @transform_2(%arg0: i32) -> (i32, i32) {
    %c0_i32 = arith.constant 0 : i32
    %c0_i32_0 = arith.constant 0 : i32
    %c0_i32_1 = arith.constant 0 : i32
    return %c0_i32, %c0_i32_0 : i32, i32
  }
  func.func @transform_3(%arg0: i32) -> (i32, i32) {
    %c0_i32 = arith.constant 0 : i32
    %c0_i32_0 = arith.constant 0 : i32
    %c0_i32_1 = arith.constant 0 : i32
    return %c0_i32, %c0_i32_0 : i32, i32
  }
  func.func @transform_4(%arg0: i32) -> (i32, i32) {
    %c0_i32 = arith.constant 0 : i32
    %c0_i32_0 = arith.constant 0 : i32
    %c0_i32_1 = arith.constant 0 : i32
    return %c0_i32, %c0_i32_0 : i32, i32
  }
  func.func @transform_5(%arg0: i32) -> (i32, i32) {
    %c0_i32 = arith.constant 0 : i32
    %c0_i32_0 = arith.constant 0 : i32
    %c0_i32_1 = arith.constant 0 : i32
    return %c0_i32, %c0_i32_0 : i32, i32
  }
  func.func @transform_6(%arg0: i32) -> (i32, i32) {
    %c0_i32 = arith.constant 0 : i32
    %c0_i32_0 = arith.constant 0 : i32
    %c0_i32_1 = arith.constant 0 : i32
    return %c0_i32, %c0_i32_0 : i32, i32
  }
}

</mosaic_0001>

<llo_original>
// kernel: tpu_custom_call.1
$region0: #{tpu_custom_call.1}
  #allocation0 [shape = 'u32[]', space=smem, size = 0x4, offset = 0x4, fixed_abs, tag = 'smem constant byte address 0x4 - core index']
  #allocation1 [shape = 'u32[144,128]{1,0:T(1,128)}', space=vmem, size = 0x12000, scoped, tag = 'internal scratch']
  %s0 = inlined_call_operand.vmem [shape: f32[16,8], index: 0, kind: input, shape index: {}]
  %s1 = inlined_call_operand.vmem [shape: f32[8,32], index: 1, kind: input, shape index: {}]
  %s2 = inlined_call_operand.vmem [shape: f32[1,32], index: 2, kind: input, shape index: {}]
  %s3 = inlined_call_operand.vmem [shape: f32[16,32], index: 3, kind: input, shape index: {}]
  %s4 = inlined_call_operand.vmem [shape: f32[1,32], index: 4, kind: input, shape index: {}]
  %s5 = inlined_call_operand.vmem [shape: f32[1,32], index: 5, kind: input, shape index: {}]
  %s6 = inlined_call_operand.hbm [shape: f32[16,32], index: 6, kind: output, shape index: {}]
  %s7 = sld [smem:[#allocation0]]
  $region34: #{tpu_custom_call.1} parent=0
    _
  %s9 = ssub.s32 1, %s7
  %s10 = scalar_select 0, %s9, %s7
  $region1: #{tpu_custom_call.1} parent=0
    #allocation2 [shape = 'u8[8192]{0}', space=vmem, size = 0x2000, scoped, tag = 'output window, operand 0, single buffered']
    #allocation3 [shape = 's32[1]{0}', space=sflag, size = 0x4, scoped, tag = 'scoped memory for tpu_custom_call.1']
    %11 = vsyncpa [#allocation3], 0
    // Predicated region
    $region2: #{tpu_custom_call.1} parent=1 // pred_check
      _
    $region3: #{tpu_custom_call.1} parent=1 // pred_check_branch
      %13 = sbr.rel (0) target = $region5
    $region4: #{tpu_custom_call.1} parent=1 // pred_region
      _
    $region5: #{tpu_custom_call.1} parent=1 // pred_fallthru
      _
    // Predicated region
    $region6: #{tpu_custom_call.1} parent=1 // pred_check
      _
    $region7: #{tpu_custom_call.1} parent=1 // pred_check_branch
      %15 = sbr.rel (0) target = $region9
    $region8: #{tpu_custom_call.1} parent=1 // pred_region
      _
    $region9: #{tpu_custom_call.1} parent=1 // pred_fallthru
      _
    // Predicated region
    $region10: #{tpu_custom_call.1} parent=1 // pred_check
      _
    $region11: #{tpu_custom_call.1} parent=1 // pred_check_branch
      %17 = sbr.rel (0) target = $region13
    $region12: #{tpu_custom_call.1} parent=1 // pred_region
      _
    $region13: #{tpu_custom_call.1} parent=1 // pred_fallthru
      _
    // Predicated region
    $region14: #{tpu_custom_call.1} parent=1 // pred_check
      _
    $region15: #{tpu_custom_call.1} parent=1 // pred_check_branch
      %19 = sbr.rel (0) target = $region17
    $region16: #{tpu_custom_call.1} parent=1 // pred_region
      _
    $region17: #{tpu_custom_call.1} parent=1 // pred_fallthru
      _
    // Predicated region
    $region18: #{tpu_custom_call.1} parent=1 // pred_check
      _
    $region19: #{tpu_custom_call.1} parent=1 // pred_check_branch
      %21 = sbr.rel (0) target = $region21
    $region20: #{tpu_custom_call.1} parent=1 // pred_region
      _
    $region21: #{tpu_custom_call.1} parent=1 // pred_fallthru
      _
    // Predicated region
    $region22: #{tpu_custom_call.1} parent=1 // pred_check
      _
    $region23: #{tpu_custom_call.1} parent=1 // pred_check_branch
      %23 = sbr.rel (0) target = $region25
    $region24: #{tpu_custom_call.1} parent=1 // pred_region
      _
    $region25: #{tpu_custom_call.1} parent=1 // pred_fallthru
      _
    %v24 = vld [vmem:[%s0] sm:$0xff]
    %v25 = vld [vmem:[%s0 + $0x8] sm:$0xff]
    %v26 = vld [vmem:[%s1] sm:$0xff]
    %v27 = vld [vmem:[%s2] sm:$0x1]
    %v29 = vlaneseq
    %v30 = vshrl.u32 %v29, 7
    %v31 = vsub.s32 0, %v30
    %v32 = vrot.slane %v27, %v31
    %vm34 = vcmask 64512
    %v36 = vsel %vm34, %v24, 0
    %v39 = vsel %vm34, %v25, 0
    %41 = vmatprep.subr.mxu0 0.0
    %42 = vmatpush1.msra.mxu0 %v26
    %43 = vmatprep.subr.mxu0 0.0
    %44 = vmatpush1.msra.mxu0 0.0
    %45 = vmatprep.subr.mxu0 0.0
    %46 = vmatpush1.msra.mxu0 0.0
    %47 = vmatprep.subr.mxu0 0.0
    %48 = vmatpush1.msra.mxu0 0.0
    %49 = vmatprep.subr.mxu0 0.0
    %50 = vmatpush1.msra.mxu0 0.0
    %51 = vmatprep.subr.mxu0 0.0
    %52 = vmatpush1.msra.mxu0 0.0
    %53 = vmatprep.subr.mxu0 0.0
    %54 = vmatpush1.msra.mxu0 0.0
    %55 = vmatprep.subr.mxu0 0.0
    %56 = vmatpush1.msra.mxu0 0.0
    %57 = vmatprep.subr.mxu0 0.0
    %58 = vmatpush1.msra.mxu0 0.0
    %59 = vmatprep.subr.mxu0 0.0
    %60 = vmatpush1.msra.mxu0 0.0
    %61 = vmatprep.subr.mxu0 0.0
    %62 = vmatpush1.msra.mxu0 0.0
    %63 = vmatprep.subr.mxu0 0.0
    %64 = vmatpush1.msra.mxu0 0.0
    %65 = vmatprep.subr.mxu0 0.0
    %66 = vmatpush1.msra.mxu0 0.0
    %67 = vmatprep.subr.mxu0 0.0
    %68 = vmatpush1.msra.mxu0 0.0
    %69 = vmatprep.subr.mxu0 0.0
    %70 = vmatpush1.msra.mxu0 0.0
    %71 = vmatprep.subr.mxu0 0.0
    %72 = vmatpush1.msra.mxu0 0.0
    %73 = vmatprep.subr.mxu0 0.0
    %74 = vmatpush1.msra.mxu0 0.0
    %75 = vmatprep.subr.mxu0 0.0
    %76 = vmatpush1.msra.mxu0 0.0
    %77 = vmatprep.subr.mxu0 0.0
    %78 = vmatpush1.msra.mxu0 0.0
    %79 = vmatprep.subr.mxu0 0.0
    %80 = vmatpush1.msra.mxu0 0.0
    %81 = vmatprep.subr.mxu0 0.0
    %82 = vmatpush1.msra.mxu0 0.0
    %83 = vmatprep.subr.mxu0 0.0
    %84 = vmatpush1.msra.mxu0 0.0
    %85 = vmatprep.subr.mxu0 0.0
    %86 = vmatpush1.msra.mxu0 0.0
    %87 = vmatprep.subr.mxu0 0.0
    %88 = vmatpush1.msra.mxu0 0.0
    %89 = vmatprep.subr.mxu0 0.0
    %90 = vmatpush1.msra.mxu0 0.0
    %91 = vmatprep.subr.mxu0 0.0
    %92 = vmatpush1.msra.mxu0 0.0
    %93 = vmatprep.subr.mxu0 0.0
    %94 = vmatpush1.msra.mxu0 0.0
    %95 = vmatprep.subr.mxu0 0.0
    %96 = vmatpush1.msra.mxu0 0.0
    %97 = vmatprep.subr.mxu0 0.0
    %98 = vmatpush1.msra.mxu0 0.0
    %99 = vmatprep.subr.mxu0 0.0
    %100 = vmatpush1.msra.mxu0 0.0
    %101 = vmatprep.subr.mxu0 0.0
    %102 = vmatpush1.msra.mxu0 0.0
    %103 = vmatprep.subr.mxu0 0.0
    %104 = vmatpush1.msra.mxu0 0.0
    %105 = vmatprep.mubr.f32.mxu0 0.0
    %106 = vmatmul.mubr.f32.gmra.mrb[0].mxu0 %v36
    %v107 = vpop.f32.mrb[0].mxu0
    %v108 = vadd.f32 %v32, %v107
    %v109 = vpop.f32.mrb[0].mxu0
    %110 = vmatprep.mubr.f32.mxu0 0.0
    %111 = vmatmul.mubr.f32.gmra.mrb[0].mxu0 %v39
    %v112 = vpop.f32.mrb[0].mxu0
    %v113 = vadd.f32 %v32, %v112
    %v114 = vpop.f32.mrb[0].mxu0
    %115 = vdwg.mxu0
    %v116 = vmul.f32 %v108, 0.5
    %v117 = vmul.f32 %v113, 0.5
    %v118 = vmul.f32 %v108, 0.044715
    %v119 = vmul.f32 %v113, 0.044715
    %v120 = vmul.f32 %v118, %v108
    %v121 = vmul.f32 %v119, %v113
    %v122 = vmul.f32 %v120, %v108
    %v123 = vmul.f32 %v121, %v113
    %v124 = vadd.f32 %v108, %v122
    %v125 = vadd.f32 %v113, %v123
    %v126 = vmul.f32 %v124, 0.7978846
    %v127 = vmul.f32 %v125, 0.7978846
    %v128 = vtanh.pop %v126
    %v129 = vtanh.pop %v127
    %v130 = vadd.f32 %v128, 1.0
    %v131 = vadd.f32 %v129, 1.0
    %v132 = vmul.f32 %v116, %v130
    %v133 = vmul.f32 %v117, %v131
    %v134 = vld [vmem:[%s3] sm:$0xff]
    %v135 = vld [vmem:[%s3 + $0x8] sm:$0xff]
    %v136 = vadd.f32 %v132, %v134
    %v137 = vadd.f32 %v133, %v135
    %v138 = vld [vmem:[%s4] sm:$0x1]
    %v139 = vld [vmem:[%s5] sm:$0x1]
    %vm140 = vcmask 261120
    %v141 = vsel %vm140, %v136, 0.0
    %142 = vadd.xlane.f32.xlu0 %v141
    %v143 = vpop.xlane.xlu0 %142
    %v144 = vsel %vm140, %v137, 0.0
    %145 = vadd.xlane.f32.xlu0 %v144
    %v146 = vpop.xlane.xlu0 %145
    %v147 = vrcp.pop 32.0
    %v148 = vmul.f32 %v143, %v147
    %v149 = vmul.f32 %v146, %v147
    %v150 = vsub.f32 %v136, %v148
    %v151 = vsub.f32 %v137, %v149
    %v152 = vmul.f32 %v150, %v150
    %v153 = vmul.f32 %v151, %v151
    %v154 = vsel %vm140, %v152, 0.0
    %155 = vadd.xlane.f32.xlu0 %v154
    %v156 = vpop.xlane.xlu0 %155
    %v157 = vsel %vm140, %v153, 0.0
    %158 = vadd.xlane.f32.xlu0 %v157
    %v159 = vpop.xlane.xlu0 %158
    %v160 = vmul.f32 %v156, %v147
    %v161 = vmul.f32 %v159, %v147
    %v162 = vadd.f32 %v160, 1e-05
    %v163 = vadd.f32 %v161, 1e-05
    %v164 = vrsqrt.pop %v162
    %v165 = vrsqrt.pop %v163
    %v166 = vmul.f32 %v150, %v164
    %v167 = vmul.f32 %v151, %v165
    %v169 = vlaneseq
    %v170 = vshrl.u32 %v169, 7
    %v171 = vsub.s32 0, %v170
    %v172 = vrot.slane %v138, %v171
    %v174 = vmul.f32 %v166, %v172
    %v175 = vmul.f32 %v167, %v172
    %v177 = vlaneseq
    %v178 = vshrl.u32 %v177, 7
    %v179 = vsub.s32 0, %v178
    %v180 = vrot.slane %v139, %v179
    %v182 = vadd.f32 %v174, %v180
    %v183 = vadd.f32 %v175, %v180
    %184 = vst.msk [vmem:[#allocation2] sm:$0xff] %vm140, %v182
    %185 = vst.msk [vmem:[#allocation2 + $0x8] sm:$0xff] %vm140, %v183
    // Predicated region
    $region26: #{tpu_custom_call.1} parent=1 // pred_check
      _
    $region27: #{tpu_custom_call.1} parent=1 // pred_check_branch
      %187 = sbr.rel (0) target = $region29
    $region28: #{tpu_custom_call.1} parent=1 // pred_region
      %s189 = ssub.s32 256, 256
      %190 = vsyncadd [#allocation3], %s189
      %s191 = sshll.u32 [#allocation2], 4
      %s192 = int_to_ptr.vmem [resolvable:$true] %s191
      %197 = dma.vmem_to_hbm [thread:$0]  %s192, 256, %s6, [#allocation3], 128, 128, 8
    $region29: #{tpu_custom_call.1} parent=1 // pred_fallthru
      _
    // Predicated region
    $region30: #{tpu_custom_call.1} parent=1 // pred_check
      _
    $region31: #{tpu_custom_call.1} parent=1 // pred_check_branch
      %199 = sbr.rel (0) target = $region33
    $region32: #{tpu_custom_call.1} parent=1 // pred_region
      %200 = dma.done [#allocation3], 256
    $region33: #{tpu_custom_call.1} parent=1 // pred_fallthru
      _
    %201 = vsyncpa [#allocation3], 1

</llo_original>
